<compile_context>
chip_gen: v5e
topology: v5e:2x2
jax: 0.10.0
libtpu: 0.0.40
codegen_flags: <defaults>
</compile_context>

<pallas_src>
import functools

import jax
import jax.numpy as jnp
from jax.experimental import pallas as pl
from jax.experimental.pallas import tpu as pltpu


# ---------------------------------------------------------------------------
# Kernels
# ---------------------------------------------------------------------------
def _layer_norm_epilogue(h, g, beta, eps, inv_h):
    # One pass over h for the stats (sum + sum of squares); rsqrt on the EUP;
    # gamma/beta folded into a single scale/shift so the normalize is one pass.
    s = jnp.sum(h, axis=-1, keepdims=True)
    ss = jnp.sum(h * h, axis=-1, keepdims=True)
    mean = s * inv_h
    var = jnp.maximum(ss * inv_h - mean * mean, 0.0)
    inv = jax.lax.rsqrt(var + eps)
    scale = inv * g
    shift = beta - mean * scale
    return h * scale + shift


def _kernel_single_k(x_ref, w_ref, b_ref, res_ref, g_ref, beta_ref, o_ref, *,
                     eps, inv_h, mxu_dtype):
    # Cast the streamed operands to bf16 on the VPU right before the MXU;
    # accumulate in f32.  Residual / bias / LN math all stay in f32.
    h = jnp.dot(x_ref[...].astype(mxu_dtype), w_ref[...].astype(mxu_dtype),
                preferred_element_type=jnp.float32)
    h = h + b_ref[...].astype(jnp.float32) + res_ref[...].astype(jnp.float32)
    y = _layer_norm_epilogue(h, g_ref[...].astype(jnp.float32),
                             beta_ref[...].astype(jnp.float32), eps, inv_h)
    o_ref[...] = y.astype(o_ref.dtype)


def _kernel_multi_k(x_ref, w_ref, b_ref, res_ref, g_ref, beta_ref, o_ref,
                    acc_ref, *, eps, inv_h, mxu_dtype):
    k = pl.program_id(1)
    part = jnp.dot(x_ref[...].astype(mxu_dtype), w_ref[...].astype(mxu_dtype),
                   preferred_element_type=jnp.float32)

    @pl.when(k == 0)
    def _():
        acc_ref[...] = part            # no zero-init + RMW on the first K step

    @pl.when(k != 0)
    def _():
        acc_ref[...] += part

    @pl.when(k == pl.num_programs(1) - 1)
    def _():
        h = (acc_ref[...]
             + b_ref[...].astype(jnp.float32)
             + res_ref[...].astype(jnp.float32))
        y = _layer_norm_epilogue(h, g_ref[...].astype(jnp.float32),
                                 beta_ref[...].astype(jnp.float32), eps, inv_h)
        o_ref[...] = y.astype(o_ref.dtype)


# ---------------------------------------------------------------------------
# Wrapper
# ---------------------------------------------------------------------------
def _round_up(x, m):
    return ((x + m - 1) // m) * m


def _vmem_capacity_bytes():
    try:
        return int(pltpu.get_tpu_info().vmem_capacity_bytes)
    except Exception:
        return 64 << 20        # conservative fallback (v7x per-TensorCore VMEM)


def _pick_k_tile(H):
    # Keep the resident weight slab small enough for 64 MiB-VMEM chips.
    if H <= 1024:
        return H
    for cand in (1024, 512, 256, 128):
        if H % cand == 0:
            return cand
    return H


def bert_self_output(hidden_states, input_tensor, weight, bias, ln_gamma,
                     ln_beta, *, eps=1e-12, max_token_tile=None,
                     mxu_dtype=jnp.bfloat16, out_dtype=None):
    """hidden_states, input_tensor: [T, H]; weight (pre-transposed): [H_in, H_out];
    bias / ln_gamma / ln_beta: [H]."""
    T, H = hidden_states.shape
    out_dtype = hidden_states.dtype if out_dtype is None else out_dtype

    # LN params / bias as lane-dense (1, H) rows (tiny, one-time copies).
    b2 = bias.reshape(1, H)
    g2 = ln_gamma.reshape(1, H)
    be2 = ln_beta.reshape(1, H)

    vmem_cap = _vmem_capacity_bytes()
    vmem_budget = int(vmem_cap * 0.70)       # headroom for Mosaic internal scratch
    if max_token_tile is None:
        # 64 MiB per-TC (v7x): 512-row tile; 128 MiB (v5e/v6e): 1024-row tile.
        max_token_tile = 512 if vmem_cap <= (64 << 20) else 1024

    ktile = _pick_k_tile(H)
    multi_k = ktile != H

    def footprint(tile):
        xb = hidden_states.dtype.itemsize
        rb = input_tensor.dtype.itemsize
        wb = weight.dtype.itemsize
        ob = jnp.dtype(out_dtype).itemsize
        return (2 * tile * ktile * xb              # x tiles (double buffered)
                + 2 * ktile * H * wb               # weight slab
                + 2 * tile * H * rb                # residual tiles
                + 2 * tile * H * ob                # output tiles
                + 2 * 3 * H * 4                    # bias / gamma / beta
                + tile * ktile * 2 + ktile * H * 2  # in-kernel bf16 MXU operands
                + tile * H * 4)                    # f32 h / accumulator

    # Token tile: multiple of 16 (bf16-friendly sublane tile), shrunk to fit VMEM.
    tile = min(max_token_tile, _round_up(T, 16))
    while tile > 16 and footprint(tile) > vmem_budget:
        tile = max(16, _round_up(tile // 2, 16))

    # Guarantee >= 2 token-axis grid steps so the "parallel" axis can shard across
    # both TensorCores on v7x (and pipelining has something to overlap elsewhere).
    if T > 64 and pl.cdiv(T, tile) < 2:
        tile = max(16, _round_up(pl.cdiv(T, 2), 16))

    n_t = pl.cdiv(T, tile)   # ragged tail handled by Pallas block masking (no jnp.pad)

    vmem_limit = min(int(footprint(tile) * 1.25) + (2 << 20), vmem_budget)
    vmem_limit = max(vmem_limit, 4 << 20)

    inv_h = 1.0 / float(H)

    if not multi_k:
        kernel = functools.partial(_kernel_single_k, eps=eps, inv_h=inv_h,
                                   mxu_dtype=mxu_dtype)
        grid = (n_t,)
        in_specs = [
            pl.BlockSpec((tile, H), lambda i: (i, 0)),    # x tile
            pl.BlockSpec((H, H), lambda i: (0, 0)),       # weight (resident, fetched once)
            pl.BlockSpec((1, H), lambda i: (0, 0)),       # bias
            pl.BlockSpec((tile, H), lambda i: (i, 0)),    # residual tile
            pl.BlockSpec((1, H), lambda i: (0, 0)),       # LN gamma
            pl.BlockSpec((1, H), lambda i: (0, 0)),       # LN beta
        ]
        out_specs = pl.BlockSpec((tile, H), lambda i: (i, 0))
        scratch = []
        dims = ("parallel",)
    else:
        # TODO(synk): multi-K path re-DMAs the (ktile, H) weight slab per token tile;
        # for H >= 2048 consider emit_pipeline over K with the weight held resident.
        kernel = functools.partial(_kernel_multi_k, eps=eps, inv_h=inv_h,
                                   mxu_dtype=mxu_dtype)
        grid = (n_t, H // ktile)
        in_specs = [
            pl.BlockSpec((tile, ktile), lambda i, k: (i, k)),
            pl.BlockSpec((ktile, H), lambda i, k: (k, 0)),
            pl.BlockSpec((1, H), lambda i, k: (0, 0)),
            pl.BlockSpec((tile, H), lambda i, k: (i, 0)),
            pl.BlockSpec((1, H), lambda i, k: (0, 0)),
            pl.BlockSpec((1, H), lambda i, k: (0, 0)),
        ]
        out_specs = pl.BlockSpec((tile, H), lambda i, k: (i, 0))
        scratch = [pltpu.VMEM((tile, H), jnp.float32)]
        dims = ("parallel", "arbitrary")

    return pl.pallas_call(
        kernel,
        out_shape=jax.ShapeDtypeStruct((T, H), out_dtype),
        grid_spec=pltpu.PrefetchScalarGridSpec(
            num_scalar_prefetch=0,
            grid=grid,
            in_specs=in_specs,
            out_specs=out_specs,
            scratch_shapes=scratch,
        ),
        compiler_params=pltpu.CompilerParams(
            dimension_semantics=dims,
            vmem_limit_bytes=vmem_limit),
    )(hidden_states, weight, b2, input_tensor, g2, be2)


# ---------------------------------------------------------------------------
# Reference + self-test
# ---------------------------------------------------------------------------
def _reference(hidden_states, input_tensor, weight, bias, gamma, beta, eps,
               mxu_dtype=jnp.bfloat16):
    # Mirrors the kernel: bf16 MXU operands, f32 accumulation, f32 residual + LN.
    x = hidden_states.astype(mxu_dtype).astype(jnp.float32)
    w = weight.astype(mxu_dtype).astype(jnp.float32)
    h = x @ w + bias.astype(jnp.float32) + input_tensor.astype(jnp.float32)
    mean = jnp.mean(h, axis=-1, keepdims=True)
    var = jnp.mean((h - mean) ** 2, axis=-1, keepdims=True)
    return (h - mean) * jax.lax.rsqrt(var + eps) * gamma + beta


if __name__ == "__main__":
    key = jax.random.PRNGKey(0)
    # Small self-test shapes (production is H=768/1024 with thousands of tokens).
    batch, seq, hidden = 2, 8, 32
    eps = 1e-12

    k1, k2, k3, k4 = jax.random.split(key, 4)
    hidden_states = jax.random.normal(k1, (batch * seq, hidden), jnp.float32)
    input_tensor = jax.random.normal(k2, (batch * seq, hidden), jnp.float32)

    # ColumnParallelLinear(hidden, hidden): torch weight [out, in] -> stored [in, out].
    w_torch_layout = jax.random.normal(k3, (hidden, hidden), jnp.float32) * 0.02
    weight = w_torch_layout.T
    bias = jax.random.normal(k4, (hidden,), jnp.float32) * 0.02
    ln_gamma = jnp.ones((hidden,), jnp.float32)
    ln_beta = jnp.zeros((hidden,), jnp.float32)

    out = bert_self_output(hidden_states, input_tensor, weight, bias,
                           ln_gamma, ln_beta, eps=eps)
    out = jax.block_until_ready(out)

    ref = _reference(hidden_states, input_tensor, weight, bias, ln_gamma,
                     ln_beta, eps)
    assert out.shape == (batch * seq, hidden)
    assert out.dtype == hidden_states.dtype
    assert jnp.allclose(out.astype(jnp.float32), ref, atol=5e-3, rtol=5e-3), \
        "mismatch vs reference"
    print("KERNEL_OK")
</pallas_src>

<mosaic_0001>
module attributes {stable_mosaic.version = 11 : i64} {
  func.func @_kernel_single_k(%arg0: i32, %arg1: memref<16x32xf32, #tpu.memory_space<vmem>>, %arg2: memref<32x32xf32, #tpu.memory_space<vmem>>, %arg3: memref<1x32xf32, #tpu.memory_space<vmem>>, %arg4: memref<16x32xf32, #tpu.memory_space<vmem>>, %arg5: memref<1x32xf32, #tpu.memory_space<vmem>>, %arg6: memref<1x32xf32, #tpu.memory_space<vmem>>, %arg7: memref<16x32xf32, #tpu.memory_space<vmem>>) attributes {dimension_semantics = [#tpu.dimension_semantics<parallel>], iteration_bounds = array<i64: 1>, scalar_prefetch = 0 : i64, scratch_operands = 0 : i64, tpu.core_type = #tpu.core_type<tc>, window_params = [{transform_indices = @transform_0, window_bounds = array<i64: 16, 32>}, {pipeline_mode = #tpu.pipeline_mode<synchronous>, transform_indices = @transform_1, window_bounds = array<i64: 32, 32>}, {pipeline_mode = #tpu.pipeline_mode<synchronous>, transform_indices = @transform_2, window_bounds = array<i64: 1, 32>}, {transform_indices = @transform_3, window_bounds = array<i64: 16, 32>}, {pipeline_mode = #tpu.pipeline_mode<synchronous>, transform_indices = @transform_4, window_bounds = array<i64: 1, 32>}, {pipeline_mode = #tpu.pipeline_mode<synchronous>, transform_indices = @transform_5, window_bounds = array<i64: 1, 32>}, {transform_indices = @transform_6, window_bounds = array<i64: 16, 32>}]} {
    %c0 = arith.constant 0 : index
    %c0_0 = arith.constant 0 : index
    %0 = vector.load %arg1[%c0, %c0_0] : memref<16x32xf32, #tpu.memory_space<vmem>>, vector<16x32xf32>
    %1 = arith.truncf %0 : vector<16x32xf32> to vector<16x32xbf16>
    %c0_1 = arith.constant 0 : index
    %c0_2 = arith.constant 0 : index
    %2 = vector.load %arg2[%c0_1, %c0_2] : memref<32x32xf32, #tpu.memory_space<vmem>>, vector<32x32xf32>
    %3 = arith.truncf %2 : vector<32x32xf32> to vector<32x32xbf16>
    %cst = arith.constant dense<0.000000e+00> : vector<16x32xf32>
    %4 = tpu.matmul %1, %3, %cst {dimension_numbers = #tpu.dot_dimension_numbers<[1], [0], [0], [1], [0, 0, 1, 1], [], []>} : vector<16x32xbf16>, vector<32x32xbf16>, vector<16x32xf32> -> vector<16x32xf32>
    %c0_3 = arith.constant 0 : index
    %c0_4 = arith.constant 0 : index
    %5 = vector.load %arg3[%c0_3, %c0_4] : memref<1x32xf32, #tpu.memory_space<vmem>>, vector<1x32xf32>
    %6 = vector.broadcast %5 : vector<1x32xf32> to vector<16x32xf32>
    %7 = arith.addf %4, %6 : vector<16x32xf32>
    %c0_5 = arith.constant 0 : index
    %c0_6 = arith.constant 0 : index
    %8 = vector.load %arg4[%c0_5, %c0_6] : memref<16x32xf32, #tpu.memory_space<vmem>>, vector<16x32xf32>
    %9 = arith.addf %7, %8 : vector<16x32xf32>
    %c0_7 = arith.constant 0 : index
    %c0_8 = arith.constant 0 : index
    %10 = vector.load %arg5[%c0_7, %c0_8] : memref<1x32xf32, #tpu.memory_space<vmem>>, vector<1x32xf32>
    %c0_9 = arith.constant 0 : index
    %c0_10 = arith.constant 0 : index
    %11 = vector.load %arg6[%c0_9, %c0_10] : memref<1x32xf32, #tpu.memory_space<vmem>>, vector<1x32xf32>
    %cst_11 = arith.constant dense<0.000000e+00> : vector<16xf32>
    %12 = vector.multi_reduction <add>, %9, %cst_11 [1] : vector<16x32xf32> to vector<16xf32>
    %13 = vector.shape_cast %12 : vector<16xf32> to vector<16x1xf32>
    %14 = arith.mulf %9, %9 : vector<16x32xf32>
    %cst_12 = arith.constant dense<0.000000e+00> : vector<16xf32>
    %15 = vector.multi_reduction <add>, %14, %cst_12 [1] : vector<16x32xf32> to vector<16xf32>
    %16 = vector.shape_cast %15 : vector<16xf32> to vector<16x1xf32>
    %cst_13 = arith.constant 3.125000e-02 : f32
    %17 = vector.broadcast %cst_13 : f32 to vector<16x1xf32>
    %18 = arith.mulf %13, %17 : vector<16x1xf32>
    %cst_14 = arith.constant 3.125000e-02 : f32
    %19 = vector.broadcast %cst_14 : f32 to vector<16x1xf32>
    %20 = arith.mulf %16, %19 : vector<16x1xf32>
    %21 = arith.mulf %18, %18 : vector<16x1xf32>
    %22 = arith.subf %20, %21 : vector<16x1xf32>
    %cst_15 = arith.constant 0.000000e+00 : f32
    %23 = vector.broadcast %cst_15 : f32 to vector<16x1xf32>
    %24 = arith.maximumf %22, %23 : vector<16x1xf32>
    %cst_16 = arith.constant 9.99999996E-13 : f32
    %25 = vector.broadcast %cst_16 : f32 to vector<16x1xf32>
    %26 = arith.addf %24, %25 : vector<16x1xf32>
    %27 = math.rsqrt %26 : vector<16x1xf32>
    %28 = vector.broadcast %27 : vector<16x1xf32> to vector<16x32xf32>
    %29 = vector.broadcast %10 : vector<1x32xf32> to vector<16x32xf32>
    %30 = arith.mulf %28, %29 : vector<16x32xf32>
    %31 = vector.broadcast %18 : vector<16x1xf32> to vector<16x32xf32>
    %32 = arith.mulf %31, %30 : vector<16x32xf32>
    %33 = vector.broadcast %11 : vector<1x32xf32> to vector<16x32xf32>
    %34 = arith.subf %33, %32 : vector<16x32xf32>
    %35 = arith.mulf %9, %30 : vector<16x32xf32>
    %36 = arith.addf %35, %34 : vector<16x32xf32>
    %c0_17 = arith.constant 0 : index
    %c0_18 = arith.constant 0 : index
    %37 = vector.load %arg7[%c0_17, %c0_18] : memref<16x32xf32, #tpu.memory_space<vmem>>, vector<16x32xf32>
    tpu.vector_store %arg7[%c0_17, %c0_18], %36 {strides = array<i32>} : memref<16x32xf32, #tpu.memory_space<vmem>>, vector<16x32xf32>,
    return
  }
  func.func @transform_0(%arg0: i32) -> (i32, i32) {
    %c0_i32 = arith.constant 0 : i32
    %c0_i32_0 = arith.constant 0 : i32
    return %arg0, %c0_i32 : i32, i32
  }
  func.func @transform_1(%arg0: i32) -> (i32, i32) {
    %c0_i32 = arith.constant 0 : i32
    %c0_i32_0 = arith.constant 0 : i32
    %c0_i32_1 = arith.constant 0 : i32
    return %c0_i32, %c0_i32_0 : i32, i32
  }
  func.func @transform_2(%arg0: i32) -> (i32, i32) {
    %c0_i32 = arith.constant 0 : i32
    %c0_i32_0 = arith.constant 0 : i32
    %c0_i32_1 = arith.constant 0 : i32
    return %c0_i32, %c0_i32_0 : i32, i32
  }
  func.func @transform_3(%arg0: i32) -> (i32, i32) {
    %c0_i32 = arith.constant 0 : i32
    %c0_i32_0 = arith.constant 0 : i32
    return %arg0, %c0_i32 : i32, i32
  }
  func.func @transform_4(%arg0: i32) -> (i32, i32) {
    %c0_i32 = arith.constant 0 : i32
    %c0_i32_0 = arith.constant 0 : i32
    %c0_i32_1 = arith.constant 0 : i32
    return %c0_i32, %c0_i32_0 : i32, i32
  }
  func.func @transform_5(%arg0: i32) -> (i32, i32) {
    %c0_i32 = arith.constant 0 : i32
    %c0_i32_0 = arith.constant 0 : i32
    %c0_i32_1 = arith.constant 0 : i32
    return %c0_i32, %c0_i32_0 : i32, i32
  }
  func.func @transform_6(%arg0: i32) -> (i32, i32) {
    %c0_i32 = arith.constant 0 : i32
    %c0_i32_0 = arith.constant 0 : i32
    return %arg0, %c0_i32 : i32, i32
  }
}

</mosaic_0001>

<llo_original>
// kernel: tpu_custom_call.1
$region0: #{tpu_custom_call.1}
  #allocation0 [shape = 'u32[]', space=smem, size = 0x4, offset = 0x4, fixed_abs, tag = 'smem constant byte address 0x4 - core index']
  #allocation1 [shape = 'u32[72,128]{1,0:T(1,128)}', space=vmem, size = 0x9000, scoped, tag = 'internal scratch']
  %s0 = inlined_call_operand.hbm [shape: f32[16,32], index: 0, kind: input, shape index: {}]
  %s1 = inlined_call_operand.hbm [shape: f32[32,32], index: 1, kind: input, shape index: {}]
  %s2 = inlined_call_operand.vmem [shape: f32[1,32], index: 2, kind: input, shape index: {}]
  %s3 = inlined_call_operand.hbm [shape: f32[16,32], index: 3, kind: input, shape index: {}]
  %s4 = inlined_call_operand.vmem [shape: f32[1,32], index: 4, kind: input, shape index: {}]
  %s5 = inlined_call_operand.vmem [shape: f32[1,32], index: 5, kind: input, shape index: {}]
  %s6 = inlined_call_operand.hbm [shape: f32[16,32], index: 6, kind: output, shape index: {}]
  %s7 = sld [smem:[#allocation0]]
  $region46: #{tpu_custom_call.1} parent=0
    _
  %s9 = ssub.s32 1, %s7
  %s10 = scalar_select 0, %s9, %s7
  $region1: #{tpu_custom_call.1} parent=0
    #allocation2 [shape = 'u8[8192]{0}', space=vmem, size = 0x2000, scoped, tag = 'input window, operand 0, single buffered']
    #allocation3 [shape = 's32[1]{0}', space=sflag, size = 0x4, scoped, tag = 'scoped memory for tpu_custom_call.1']
    #allocation4 [shape = 's32[1]{0}', space=sflag, size = 0x4, scoped, tag = 'scoped memory for tpu_custom_call.1']
    #allocation5 [shape = 'u8[16384]{0}', space=vmem, size = 0x4000, scoped, tag = 'input window, operand 1, single buffered']
    #allocation6 [shape = 's32[1]{0}', space=sflag, size = 0x4, scoped, tag = 'scoped memory for tpu_custom_call.1']
    #allocation7 [shape = 'u8[8192]{0}', space=vmem, size = 0x2000, scoped, tag = 'input window, operand 3, single buffered']
    #allocation8 [shape = 'u8[8192]{0}', space=vmem, size = 0x2000, scoped, tag = 'output window, operand 0, single buffered']
    %11 = vsyncpa [#allocation3], 0
    %12 = vsyncpa [#allocation6], 0
    %13 = vsyncpa [#allocation4], 0
    // Predicated region
    $region2: #{tpu_custom_call.1} parent=1 // pred_check
      _
    $region3: #{tpu_custom_call.1} parent=1 // pred_check_branch
      %15 = sbr.rel (0) target = $region5
    $region4: #{tpu_custom_call.1} parent=1 // pred_region
      %17 = vsyncadd [#allocation3], 0
      %s18 = sshll.u32 %s0, 4
      %s19 = int_to_ptr.hbm [resolvable:$true] %s18
      %s20 = sshll.u32 [#allocation2], 4
      %s21 = int_to_ptr.vmem [resolvable:$true] %s20
      %26 = dma.hbm_to_vmem [thread:$0]  %s19, 256, %s21, [#allocation3], 128, 128, 8
    $region5: #{tpu_custom_call.1} parent=1 // pred_fallthru
      _
    // Predicated region
    $region6: #{tpu_custom_call.1} parent=1 // pred_check
      _
    $region7: #{tpu_custom_call.1} parent=1 // pred_check_branch
      %28 = sbr.rel (0) target = $region9
    $region8: #{tpu_custom_call.1} parent=1 // pred_region
      %30 = vsyncadd [#allocation6], 0
      %s31 = sshll.u32 %s1, 4
      %s32 = int_to_ptr.hbm [resolvable:$true] %s31
      %s33 = sshll.u32 [#allocation5], 4
      %s34 = int_to_ptr.vmem [resolvable:$true] %s33
      %39 = dma.hbm_to_vmem [thread:$0]  %s32, 512, %s34, [#allocation6], 128, 128, 8
    $region9: #{tpu_custom_call.1} parent=1 // pred_fallthru
      _
    // Predicated region
    $region10: #{tpu_custom_call.1} parent=1 // pred_check
      _
    $region11: #{tpu_custom_call.1} parent=1 // pred_check_branch
      %41 = sbr.rel (0) target = $region13
    $region12: #{tpu_custom_call.1} parent=1 // pred_region
      _
    $region13: #{tpu_custom_call.1} parent=1 // pred_fallthru
      _
    // Predicated region
    $region14: #{tpu_custom_call.1} parent=1 // pred_check
      _
    $region15: #{tpu_custom_call.1} parent=1 // pred_check_branch
      %43 = sbr.rel (0) target = $region17
    $region16: #{tpu_custom_call.1} parent=1 // pred_region
      %45 = vsyncadd [#allocation6], 0
      %s46 = sshll.u32 %s3, 4
      %s47 = int_to_ptr.hbm [resolvable:$true] %s46
      %s48 = sshll.u32 [#allocation7], 4
      %s49 = int_to_ptr.vmem [resolvable:$true] %s48
      %54 = dma.hbm_to_vmem [thread:$0]  %s47, 256, %s49, [#allocation6], 128, 128, 8
    $region17: #{tpu_custom_call.1} parent=1 // pred_fallthru
      _
    // Predicated region
    $region18: #{tpu_custom_call.1} parent=1 // pred_check
      _
    $region19: #{tpu_custom_call.1} parent=1 // pred_check_branch
      %56 = sbr.rel (0) target = $region21
    $region20: #{tpu_custom_call.1} parent=1 // pred_region
      _
    $region21: #{tpu_custom_call.1} parent=1 // pred_fallthru
      _
    // Predicated region
    $region22: #{tpu_custom_call.1} parent=1 // pred_check
      _
    $region23: #{tpu_custom_call.1} parent=1 // pred_check_branch
      %58 = sbr.rel (0) target = $region25
    $region24: #{tpu_custom_call.1} parent=1 // pred_region
      _
    $region25: #{tpu_custom_call.1} parent=1 // pred_fallthru
      _
    // Predicated region
    $region26: #{tpu_custom_call.1} parent=1 // pred_check
      _
    $region27: #{tpu_custom_call.1} parent=1 // pred_check_branch
      %60 = sbr.rel (0) target = $region29
    $region28: #{tpu_custom_call.1} parent=1 // pred_region
      %62 = dma.done [#allocation3], 256
    $region29: #{tpu_custom_call.1} parent=1 // pred_fallthru
      _
    // Predicated region
    $region30: #{tpu_custom_call.1} parent=1 // pred_check
      _
    $region31: #{tpu_custom_call.1} parent=1 // pred_check_branch
      %64 = sbr.rel (0) target = $region33
    $region32: #{tpu_custom_call.1} parent=1 // pred_region
      %66 = dma.done [#allocation6], 512
    $region33: #{tpu_custom_call.1} parent=1 // pred_fallthru
      _
    // Predicated region
    $region34: #{tpu_custom_call.1} parent=1 // pred_check
      _
    $region35: #{tpu_custom_call.1} parent=1 // pred_check_branch
      %68 = sbr.rel (0) target = $region37
    $region36: #{tpu_custom_call.1} parent=1 // pred_region
      %70 = dma.done [#allocation6], 256
    $region37: #{tpu_custom_call.1} parent=1 // pred_fallthru
      _
    %v72 = vld [vmem:[#allocation2] sm:$0xff]
    %v73 = vld [vmem:[#allocation2 + $0x8] sm:$0xff]
    %v74 = vpack.c.bf16 %v73, %v72
    %v75 = vld [vmem:[#allocation5] sm:$0xff]
    %v76 = vld [vmem:[#allocation5 + $0x8] sm:$0xff]
    %v77 = vld [vmem:[#allocation5 + $0x10] sm:$0xff]
    %v78 = vld [vmem:[#allocation5 + $0x18] sm:$0xff]
    %v79 = vpack.c.bf16 %v76, %v75
    %v80 = vpack.c.bf16 %v78, %v77
    %v81 = vld [vmem:[%s2] sm:$0x1]
    %v83 = vperm.slane %v81, 0
    %vm85 = vcmask 261120
    %v87 = vsel %vm85, %v74, 0
    %89 = vmatpush.bf16.msra.mxu0 0
    %90 = vmatpush.bf16.msra.mxu0 0
    %91 = vmatpush.bf16.msra.mxu0 0
    %92 = vmatpush.bf16.msra.mxu0 0
    %93 = vmatpush.bf16.msra.mxu0 0
    %94 = vmatpush.bf16.msra.mxu0 0
    %95 = vmatpush.bf16.msra.mxu0 %v80
    %96 = vmatpush.bf16.msra.mxu0 %v79
    %97 = vmatmul.bf16.gmra.mxu0 %v87
    %v98 = vpop.f32.mrf.mxu0
    %v99 = vadd.f32 %v83, %v98
    %v100 = vpop.f32.mrf.mxu0
    %v101 = vadd.f32 %v83, %v100
    %102 = vdwg.mxu0
    %v103 = vld [vmem:[#allocation7] sm:$0xff]
    %v104 = vld [vmem:[#allocation7 + $0x8] sm:$0xff]
    %v105 = vadd.f32 %v99, %v103
    %v106 = vadd.f32 %v101, %v104
    %v107 = vld [vmem:[%s4] sm:$0x1]
    %v108 = vld [vmem:[%s5] sm:$0x1]
    %v109 = vsel %vm85, %v105, 0.0
    %110 = vadd.xlane.f32.xlu0 %v109
    %v111 = vpop.xlane.xlu0 %110
    %v112 = vsel %vm85, %v106, 0.0
    %113 = vadd.xlane.f32.xlu0 %v112
    %v114 = vpop.xlane.xlu0 %113
    %v115 = vmul.f32 %v105, %v105
    %v116 = vmul.f32 %v106, %v106
    %v117 = vsel %vm85, %v115, 0.0
    %118 = vadd.xlane.f32.xlu0 %v117
    %v119 = vpop.xlane.xlu0 %118
    %v120 = vsel %vm85, %v116, 0.0
    %121 = vadd.xlane.f32.xlu0 %v120
    %v122 = vpop.xlane.xlu0 %121
    %v123 = vmul.f32 %v111, 0.03125
    %v124 = vmul.f32 %v114, 0.03125
    %v125 = vmul.f32 %v119, 0.03125
    %v126 = vmul.f32 %v122, 0.03125
    %v127 = vmul.f32 %v123, %v123
    %v128 = vmul.f32 %v124, %v124
    %v129 = vsub.f32 %v125, %v127
    %v130 = vsub.f32 %v126, %v128
    %v131 = vmax.f32 %v129, 0.0
    %v132 = vmax.f32 %v130, 0.0
    %v133 = vadd.f32 %v131, 1e-12
    %v134 = vadd.f32 %v132, 1e-12
    %v135 = vrsqrt.pop %v133
    %v136 = vmul.f32 %v135, %v133
    %v137 = vmul.f32 %v136, %v135
    %v138 = vmul.f32 0.5, %v137
    %v139 = vsub.f32 1.5, %v138
    %v140 = vmul.f32 %v135, %v139
    %vm141 = vweird.f32 %v133
    %vm142 = vweird.f32 %v135
    %vm143 = vmor %vm141, %vm142
    %v144 = vsel %vm143, %v135, %v140
    %v145 = vrsqrt.pop %v134
    %v146 = vmul.f32 %v145, %v134
    %v147 = vmul.f32 %v146, %v145
    %v148 = vmul.f32 0.5, %v147
    %v149 = vsub.f32 1.5, %v148
    %v150 = vmul.f32 %v145, %v149
    %vm151 = vweird.f32 %v134
    %vm152 = vweird.f32 %v145
    %vm153 = vmor %vm151, %vm152
    %v154 = vsel %vm153, %v145, %v150
    %v156 = vperm.slane %v107, 0
    %v158 = vmul.f32 %v144, %v156
    %v159 = vmul.f32 %v154, %v156
    %v160 = vmul.f32 %v123, %v158
    %v161 = vmul.f32 %v124, %v159
    %v163 = vperm.slane %v108, 0
    %v165 = vsub.f32 %v163, %v160
    %v166 = vsub.f32 %v163, %v161
    %v167 = vmul.f32 %v105, %v158
    %v168 = vmul.f32 %v106, %v159
    %v169 = vadd.f32 %v167, %v165
    %v170 = vadd.f32 %v168, %v166
    %171 = vst.msk [vmem:[#allocation8] sm:$0xff] %vm85, %v169
    %172 = vst.msk [vmem:[#allocation8 + $0x8] sm:$0xff] %vm85, %v170
    // Predicated region
    $region38: #{tpu_custom_call.1} parent=1 // pred_check
      _
    $region39: #{tpu_custom_call.1} parent=1 // pred_check_branch
      %174 = sbr.rel (0) target = $region41
    $region40: #{tpu_custom_call.1} parent=1 // pred_region
      %176 = vsyncadd [#allocation4], 0
      %s177 = sshll.u32 [#allocation8], 4
      %s178 = int_to_ptr.vmem [resolvable:$true] %s177
      %s179 = sshll.u32 %s6, 4
      %s180 = int_to_ptr.hbm [resolvable:$true] %s179
      %185 = dma.vmem_to_hbm [thread:$0]  %s178, 256, %s180, [#allocation4], 128, 128, 8
    $region41: #{tpu_custom_call.1} parent=1 // pred_fallthru
      _
    // Predicated region
    $region42: #{tpu_custom_call.1} parent=1 // pred_check
      _
    $region43: #{tpu_custom_call.1} parent=1 // pred_check_branch
      %187 = sbr.rel (0) target = $region45
    $region44: #{tpu_custom_call.1} parent=1 // pred_region
      %189 = dma.done [#allocation4], 256
    $region45: #{tpu_custom_call.1} parent=1 // pred_fallthru
      _
    %190 = vsyncpa [#allocation3], 1
    %191 = vsyncpa [#allocation6], 1
    %192 = vsyncpa [#allocation4], 1

</llo_original>
